<compile_context>
chip_gen: v7x
topology: tpu7x:2x2x1
jax: 0.10.0
libtpu: 0.0.40
codegen_flags: <defaults>
</compile_context>

<pallas_src>
import functools

import jax
import jax.numpy as jnp
from jax.experimental import pallas as pl
from jax.experimental.pallas import tpu as pltpu

LANE = 128      # TPU lane width (last dim granularity)
SUBLANE = 8     # TPU sublane granularity (second-to-last dim)


def _pad_axis(a, axis, multiple):
    """Zero-pad `a` along `axis` up to the next multiple of `multiple`."""
    size = a.shape[axis]
    pad = (-size) % multiple
    if pad == 0:
        return a
    widths = [(0, 0)] * a.ndim
    widths[axis] = (0, pad)
    return jnp.pad(a, widths)


def mlp_kernel(x_ref, w1_ref, b1_ref, w2_ref, b2_ref, o_ref):
    """Fused: ReLU(x @ W1_t + b1) @ W2_t + b2 on one batch tile."""
    h = jnp.maximum(
        jnp.dot(x_ref[...], w1_ref[...], preferred_element_type=jnp.float32)
        + b1_ref[...],
        0.0,
    )
    # TODO(synk): Dropout(0.5) is identity at inference; training-mode random
    # masking (pltpu.prng_seed / prng_random_bits) is intentionally omitted.
    o_ref[...] = (
        jnp.dot(h, w2_ref[...], preferred_element_type=jnp.float32) + b2_ref[...]
    ).astype(o_ref.dtype)


def prepare_params(w1, b1, w2, b2):
    """One-time parameter preprocessing (transpose + lane padding).

    w1: (H1, F), b1: (H1,)  -- first nn.Linear  (PyTorch layout)
    w2: (O, H1), b2: (O,)   -- second nn.Linear (PyTorch layout)
    Returns padded, pre-transposed tensors ready for the kernel plus O.
    """
    O = w2.shape[0]
    w1_t = _pad_axis(_pad_axis(jnp.asarray(w1, jnp.float32).T, 0, LANE), 1, LANE)
    b1_p = _pad_axis(jnp.asarray(b1, jnp.float32).reshape(1, -1), 1, LANE)
    w2_t = _pad_axis(_pad_axis(jnp.asarray(w2, jnp.float32).T, 0, LANE), 1, LANE)
    b2_p = _pad_axis(jnp.asarray(b2, jnp.float32).reshape(1, -1), 1, LANE)
    return w1_t, b1_p, w2_t, b2_p, O


@functools.partial(jax.jit, static_argnames=("out_features", "tile_b"))
def tweet_disaster_forward(x, w1_t, b1_p, w2_t, b2_p, *, out_features, tile_b=256):
    """Forward pass matching TweetDisasterModel.forward (eval mode).

    x: (B, F) float32.  Weights must come from prepare_params().
    Returns (B, out_features) float32 logits.
    """
    B, _ = x.shape
    F_pad, H_pad = w1_t.shape
    H_pad2, O_pad = w2_t.shape
    assert H_pad == H_pad2

    # Clamp the batch tile to the (sublane-rounded) batch so tiny batches do
    # not inflate the padded output slab; keep it a multiple of 8.
    b_round = B + (-B) % SUBLANE
    tb = min(tile_b, b_round)
    tb = max(SUBLANE, tb - (tb % SUBLANE))

    # Pad batch to a tile multiple and features to the padded lane width.
    x_p = _pad_axis(_pad_axis(x.astype(jnp.float32), 0, tb), 1, LANE)
    assert x_p.shape[1] == F_pad, (x_p.shape, F_pad)
    B_pad = x_p.shape[0]
    grid = (B_pad // tb,)

    flops = 2 * B_pad * (F_pad * H_pad + H_pad * O_pad)
    bytes_accessed = 4 * (
        B_pad * F_pad + F_pad * H_pad + H_pad + H_pad * O_pad + O_pad + B_pad * O_pad
    )

    out = pl.pallas_call(
        mlp_kernel,
        out_shape=jax.ShapeDtypeStruct((B_pad, O_pad), jnp.float32),
        grid=grid,
        in_specs=[
            pl.BlockSpec((tb, F_pad), lambda i: (i, 0)),     # x: streamed per tile
            pl.BlockSpec((F_pad, H_pad), lambda i: (0, 0)),  # W1^T: VMEM-resident
            pl.BlockSpec((1, H_pad), lambda i: (0, 0)),      # b1:   VMEM-resident
            pl.BlockSpec((H_pad, O_pad), lambda i: (0, 0)),  # W2^T: VMEM-resident
            pl.BlockSpec((1, O_pad), lambda i: (0, 0)),      # b2:   VMEM-resident
        ],
        out_specs=pl.BlockSpec((tb, O_pad), lambda i: (i, 0)),
        compiler_params=pltpu.CompilerParams(
            dimension_semantics=("parallel",),  # shards across TCs on v7x
        ),
        cost_estimate=pl.CostEstimate(
            flops=flops, transcendentals=0, bytes_accessed=bytes_accessed
        ),
    )(x_p, w1_t, b1_p, w2_t, b2_p)

    # Drop batch/output padding so padded logits never reach the caller.
    return out[:B, :out_features]


def _reference(x, w1, b1, w2, b2):
    # Pure-JAX reference of the PyTorch forward (eval mode: dropout = identity).
    h = jnp.maximum(x @ w1.T + b1, 0.0)
    return h @ w2.T + b2


if __name__ == "__main__":
    # Shapes consistent with the module: input_shape=128 features,
    # hidden_units1=128 (hidden_units2 is unused by the module), out_shape=2.
    # Batch 256 with tile 128 -> the grid actually iterates (2 tiles).
    B, F, H1, O = 256, 128, 128, 2
    TILE_B = 128

    key = jax.random.PRNGKey(0)
    kx, k1, k2, k3, k4 = jax.random.split(key, 5)

    # PyTorch-style U(-1/sqrt(fan_in), 1/sqrt(fan_in)) init.
    x = jax.random.normal(kx, (B, F), dtype=jnp.float32)
    bound1 = 1.0 / jnp.sqrt(jnp.float32(F))
    w1 = jax.random.uniform(k1, (H1, F), jnp.float32, -bound1, bound1)
    b1 = jax.random.uniform(k2, (H1,), jnp.float32, -bound1, bound1)
    bound2 = 1.0 / jnp.sqrt(jnp.float32(H1))
    w2 = jax.random.uniform(k3, (O, H1), jnp.float32, -bound2, bound2)
    b2 = jax.random.uniform(k4, (O,), jnp.float32, -bound2, bound2)

    # One-time weight preprocessing (not on the per-forward path).
    w1_t, b1_p, w2_t, b2_p, out_features = prepare_params(w1, b1, w2, b2)

    out = tweet_disaster_forward(
        x, w1_t, b1_p, w2_t, b2_p, out_features=out_features, tile_b=TILE_B
    )
    out = jax.block_until_ready(out)

    ref = _reference(x, w1, b1, w2, b2)
    assert out.shape == (B, O), out.shape
    assert jnp.allclose(out, ref, atol=1e-5, rtol=1e-5), (out, ref)

    print("KERNEL_OK")
</pallas_src>

<mosaic_0001>
module attributes {stable_mosaic.version = 11 : i64} {
  func.func @mlp_kernel(%arg0: i32, %arg1: memref<128x128xf32, #tpu.memory_space<vmem>>, %arg2: memref<128x128xf32, #tpu.memory_space<vmem>>, %arg3: memref<1x128xf32, #tpu.memory_space<vmem>>, %arg4: memref<128x128xf32, #tpu.memory_space<vmem>>, %arg5: memref<1x128xf32, #tpu.memory_space<vmem>>, %arg6: memref<128x128xf32, #tpu.memory_space<vmem>>) attributes {dimension_semantics = [#tpu.dimension_semantics<parallel>], iteration_bounds = array<i64: 2>, scalar_prefetch = 0 : i64, scratch_operands = 0 : i64, tpu.core_type = #tpu.core_type<tc>, window_params = [{transform_indices = @transform_0, window_bounds = array<i64: 128, 128>}, {pipeline_mode = #tpu.pipeline_mode<synchronous>, transform_indices = @transform_1, window_bounds = array<i64: 128, 128>}, {pipeline_mode = #tpu.pipeline_mode<synchronous>, transform_indices = @transform_2, window_bounds = array<i64: 1, 128>}, {pipeline_mode = #tpu.pipeline_mode<synchronous>, transform_indices = @transform_3, window_bounds = array<i64: 128, 128>}, {pipeline_mode = #tpu.pipeline_mode<synchronous>, transform_indices = @transform_4, window_bounds = array<i64: 1, 128>}, {transform_indices = @transform_5, window_bounds = array<i64: 128, 128>}]} {
    %c0 = arith.constant 0 : index
    %c0_0 = arith.constant 0 : index
    %0 = vector.load %arg1[%c0, %c0_0] : memref<128x128xf32, #tpu.memory_space<vmem>>, vector<128x128xf32>
    %c0_1 = arith.constant 0 : index
    %c0_2 = arith.constant 0 : index
    %1 = vector.load %arg2[%c0_1, %c0_2] : memref<128x128xf32, #tpu.memory_space<vmem>>, vector<128x128xf32>
    %cst = arith.constant dense<0.000000e+00> : vector<128x128xf32>
    %2 = tpu.matmul %0, %1, %cst {dimension_numbers = #tpu.dot_dimension_numbers<[1], [0], [0], [1], [0, 0, 1, 1], [], []>} : vector<128x128xf32>, vector<128x128xf32>, vector<128x128xf32> -> vector<128x128xf32>
    %c0_3 = arith.constant 0 : index
    %c0_4 = arith.constant 0 : index
    %3 = vector.load %arg3[%c0_3, %c0_4] : memref<1x128xf32, #tpu.memory_space<vmem>>, vector<1x128xf32>
    %4 = vector.broadcast %3 : vector<1x128xf32> to vector<128x128xf32>
    %5 = arith.addf %2, %4 : vector<128x128xf32>
    %cst_5 = arith.constant 0.000000e+00 : f32
    %6 = vector.broadcast %cst_5 : f32 to vector<128x128xf32>
    %7 = arith.maximumf %5, %6 : vector<128x128xf32>
    %c0_6 = arith.constant 0 : index
    %c0_7 = arith.constant 0 : index
    %8 = vector.load %arg4[%c0_6, %c0_7] : memref<128x128xf32, #tpu.memory_space<vmem>>, vector<128x128xf32>
    %cst_8 = arith.constant dense<0.000000e+00> : vector<128x128xf32>
    %9 = tpu.matmul %7, %8, %cst_8 {dimension_numbers = #tpu.dot_dimension_numbers<[1], [0], [0], [1], [0, 0, 1, 1], [], []>} : vector<128x128xf32>, vector<128x128xf32>, vector<128x128xf32> -> vector<128x128xf32>
    %c0_9 = arith.constant 0 : index
    %c0_10 = arith.constant 0 : index
    %10 = vector.load %arg5[%c0_9, %c0_10] : memref<1x128xf32, #tpu.memory_space<vmem>>, vector<1x128xf32>
    %11 = vector.broadcast %10 : vector<1x128xf32> to vector<128x128xf32>
    %12 = arith.addf %9, %11 : vector<128x128xf32>
    %c0_11 = arith.constant 0 : index
    %c0_12 = arith.constant 0 : index
    %13 = vector.load %arg6[%c0_11, %c0_12] : memref<128x128xf32, #tpu.memory_space<vmem>>, vector<128x128xf32>
    tpu.vector_store %arg6[%c0_11, %c0_12], %12 {strides = array<i32>} : memref<128x128xf32, #tpu.memory_space<vmem>>, vector<128x128xf32>,
    return
  }
  func.func @transform_0(%arg0: i32) -> (i32, i32) {
    %c0_i32 = arith.constant 0 : i32
    %c0_i32_0 = arith.constant 0 : i32
    return %arg0, %c0_i32 : i32, i32
  }
  func.func @transform_1(%arg0: i32) -> (i32, i32) {
    %c0_i32 = arith.constant 0 : i32
    %c0_i32_0 = arith.constant 0 : i32
    %c0_i32_1 = arith.constant 0 : i32
    return %c0_i32, %c0_i32_0 : i32, i32
  }
  func.func @transform_2(%arg0: i32) -> (i32, i32) {
    %c0_i32 = arith.constant 0 : i32
    %c0_i32_0 = arith.constant 0 : i32
    %c0_i32_1 = arith.constant 0 : i32
    return %c0_i32, %c0_i32_0 : i32, i32
  }
  func.func @transform_3(%arg0: i32) -> (i32, i32) {
    %c0_i32 = arith.constant 0 : i32
    %c0_i32_0 = arith.constant 0 : i32
    %c0_i32_1 = arith.constant 0 : i32
    return %c0_i32, %c0_i32_0 : i32, i32
  }
  func.func @transform_4(%arg0: i32) -> (i32, i32) {
    %c0_i32 = arith.constant 0 : i32
    %c0_i32_0 = arith.constant 0 : i32
    %c0_i32_1 = arith.constant 0 : i32
    return %c0_i32, %c0_i32_0 : i32, i32
  }
  func.func @transform_5(%arg0: i32) -> (i32, i32) {
    %c0_i32 = arith.constant 0 : i32
    %c0_i32_0 = arith.constant 0 : i32
    return %arg0, %c0_i32 : i32, i32
  }
}

</mosaic_0001>

<llo_original>
// kernel: tweet_disaster_forward.1
$region0: #{tweet_disaster_forward.1}
  #allocation0 [shape = 'u32[]', space=smem, size = 0x4, offset = 0x4, fixed_abs, tag = 'smem constant byte address 0x4 - core index']
  #allocation1 [shape = 'u32[144,128]{1,0:T(1,128)}', space=vmem, size = 0x12000, scoped, tag = 'internal scratch']
  %s0 = inlined_call_operand.hbm [shape: f32[256,128], index: 0, kind: input, shape index: {}]
  %s1 = inlined_call_operand.hbm [shape: f32[128,128], index: 1, kind: input, shape index: {}]
  %s2 = inlined_call_operand.vmem [shape: f32[1,128], index: 2, kind: input, shape index: {}]
  %s3 = inlined_call_operand.hbm [shape: f32[128,128], index: 3, kind: input, shape index: {}]
  %s4 = inlined_call_operand.vmem [shape: f32[1,128], index: 4, kind: input, shape index: {}]
  %s5 = inlined_call_operand.vmem [shape: f32[256,128], index: 5, kind: output, shape index: {}]
  %s6 = sld [smem:[#allocation0]]
  $region65: #{tweet_disaster_forward.1} parent=0
    _
  %s8 = ssub.s32 1, %s6
  %s9 = scalar_select 0, %s8, %s6
  $region1: #{tweet_disaster_forward.1} parent=0
    #allocation2 [shape = 'u8[131072]{0}', space=vmem, size = 0x20000, scoped, tag = 'input window, operand 0']
    #allocation3 [shape = 's32[2]{0}', space=sflag, size = 0x8, scoped, tag = 'scoped memory for tweet_disaster_forward.1']
    #allocation4 [shape = 'u8[65536]{0}', space=vmem, size = 0x10000, scoped, tag = 'input window, operand 1, single buffered']
    #allocation5 [shape = 's32[1]{0}', space=sflag, size = 0x4, scoped, tag = 'scoped memory for tweet_disaster_forward.1']
    #allocation6 [shape = 'u8[65536]{0}', space=vmem, size = 0x10000, scoped, tag = 'input window, operand 3, single buffered']
    %10 = vsyncpa [#allocation3], 0
    %s11 = scalar_lea.sflag [#allocation3], 1
    %12 = vsyncpa %s11, 0
    %13 = vsyncpa [#allocation5], 0
    loop: start=0, step=1, limit=4
    $region2: #{tweet_disaster_forward.1} parent=1 // loop_pre_header
      _
    $region3: #{tweet_disaster_forward.1} parent=1 // loop_header
      %s15 = sphi 0, %s19
      %p16 = scmp.ge.s32.totalorder %s15, 4
      %s25 = sphi 0, %s27
      %s28 = sphi 0, %s25
      %s29 = sphi 0, %s28
      %s45 = sphi 0, %s29
      %s49 = sphi 0, %s49
      %s51 = sphi 0, %s49
      %s52 = sphi 0, %s51
      %s66 = sphi 0, %s52
      %s70 = sphi 0, %s70
      %s72 = sphi 0, %s70
      %s73 = sphi 0, %s72
      %s87 = sphi 0, %s73
      %s91 = sphi 0, %s91
      %s93 = sphi 0, %s91
      %s94 = sphi 0, %s93
      %s108 = sphi 0, %s94
      %s112 = sphi 0, %s112
      %s114 = sphi 0, %s112
      %s115 = sphi 0, %s114
      %s129 = sphi 0, %s115
      %s135 = sphi 0, %s137
      %s138 = sphi 0, %s135
      %s139 = sphi 0, %s138
      %s155 = sphi 0, %s139
    $region4: #{tweet_disaster_forward.1} parent=1 // loop_header_branch
      %18 = sbr.rel (%p16) target = $region8
    $region5: #{tweet_disaster_forward.1} parent=1 // loop_body
      %s20 = ssub.s32 %s15, 1
      %s21 = ssub.s32 %s15, 2
      %s22 = sadd.s32 %s15, 1
      %s23 = ssub.s32 %s15, %s22
      %p24 = scmp.eq.s32.totalorder %s23, 0
      %s26 = sadd.s32 %s25, 1
      %s27 = scalar_select %p24, %s25, %s26
      %p30 = pneg %p24
      %p31 = scmp.eq.s32.totalorder %s15, 1
      %p32 = por %p30, %p31
      %p33 = scmp.ne.s32.totalorder %s25, %s28
      %p34 = scmp.eq.s32.totalorder %s15, 0
      %p35 = por %p33, %p34
      %p36 = scmp.ne.s32.totalorder %s25, %s28
      %p37 = scmp.eq.s32.totalorder %s20, 1
      %p38 = por %p36, %p37
      %p39 = scmp.ne.s32.totalorder %s28, %s29
      %p40 = scmp.eq.s32.totalorder %s20, 0
      %p41 = por %p39, %p40
      %p42 = scmp.ne.s32.totalorder %s28, %s29
      %p43 = scmp.eq.s32.totalorder %s21, 1
      %p44 = por %p42, %p43
      %p46 = scmp.ne.s32.totalorder %s29, %s45
      %p47 = scmp.eq.s32.totalorder %s21, 0
      %p48 = por %p46, %p47
      %s50 = sadd.s32 %s49, 1
      %p53 = scmp.eq.s32.totalorder %s15, 1
      %p54 = scmp.ne.s32.totalorder %s49, %s51
      %p55 = scmp.eq.s32.totalorder %s15, 0
      %p56 = por %p54, %p55
      %p57 = scmp.ne.s32.totalorder %s49, %s51
      %p58 = scmp.eq.s32.totalorder %s20, 1
      %p59 = por %p57, %p58
      %p60 = scmp.ne.s32.totalorder %s51, %s52
      %p61 = scmp.eq.s32.totalorder %s20, 0
      %p62 = por %p60, %p61
      %p63 = scmp.ne.s32.totalorder %s51, %s52
      %p64 = scmp.eq.s32.totalorder %s21, 1
      %p65 = por %p63, %p64
      %p67 = scmp.ne.s32.totalorder %s52, %s66
      %p68 = scmp.eq.s32.totalorder %s21, 0
      %p69 = por %p67, %p68
      %s71 = sadd.s32 %s70, 1
      %p74 = scmp.eq.s32.totalorder %s15, 1
      %p75 = scmp.ne.s32.totalorder %s70, %s72
      %p76 = scmp.eq.s32.totalorder %s15, 0
      %p77 = por %p75, %p76
      %p78 = scmp.ne.s32.totalorder %s70, %s72
      %p79 = scmp.eq.s32.totalorder %s20, 1
      %p80 = por %p78, %p79
      %p81 = scmp.ne.s32.totalorder %s72, %s73
      %p82 = scmp.eq.s32.totalorder %s20, 0
      %p83 = por %p81, %p82
      %p84 = scmp.ne.s32.totalorder %s72, %s73
      %p85 = scmp.eq.s32.totalorder %s21, 1
      %p86 = por %p84, %p85
      %p88 = scmp.ne.s32.totalorder %s73, %s87
      %p89 = scmp.eq.s32.totalorder %s21, 0
      %p90 = por %p88, %p89
      %s92 = sadd.s32 %s91, 1
      %p95 = scmp.eq.s32.totalorder %s15, 1
      %p96 = scmp.ne.s32.totalorder %s91, %s93
      %p97 = scmp.eq.s32.totalorder %s15, 0
      %p98 = por %p96, %p97
      %p99 = scmp.ne.s32.totalorder %s91, %s93
      %p100 = scmp.eq.s32.totalorder %s20, 1
      %p101 = por %p99, %p100
      %p102 = scmp.ne.s32.totalorder %s93, %s94
      %p103 = scmp.eq.s32.totalorder %s20, 0
      %p104 = por %p102, %p103
      %p105 = scmp.ne.s32.totalorder %s93, %s94
      %p106 = scmp.eq.s32.totalorder %s21, 1
      %p107 = por %p105, %p106
      %p109 = scmp.ne.s32.totalorder %s94, %s108
      %p110 = scmp.eq.s32.totalorder %s21, 0
      %p111 = por %p109, %p110
      %s113 = sadd.s32 %s112, 1
      %p116 = scmp.eq.s32.totalorder %s15, 1
      %p117 = scmp.ne.s32.totalorder %s112, %s114
      %p118 = scmp.eq.s32.totalorder %s15, 0
      %p119 = por %p117, %p118
      %p120 = scmp.ne.s32.totalorder %s112, %s114
      %p121 = scmp.eq.s32.totalorder %s20, 1
      %p122 = por %p120, %p121
      %p123 = scmp.ne.s32.totalorder %s114, %s115
      %p124 = scmp.eq.s32.totalorder %s20, 0
      %p125 = por %p123, %p124
      %p126 = scmp.ne.s32.totalorder %s114, %s115
      %p127 = scmp.eq.s32.totalorder %s21, 1
      %p128 = por %p126, %p127
      %p130 = scmp.ne.s32.totalorder %s115, %s129
      %p131 = scmp.eq.s32.totalorder %s21, 0
      %p132 = por %p130, %p131
      %s133 = ssub.s32 %s15, %s22
      %p134 = scmp.eq.s32.totalorder %s133, 0
      %s136 = sadd.s32 %s135, 1
      %s137 = scalar_select %p134, %s135, %s136
      %p140 = pneg %p134
      %p141 = scmp.eq.s32.totalorder %s15, 1
      %p142 = por %p140, %p141
      %p143 = scmp.ne.s32.totalorder %s135, %s138
      %p144 = scmp.eq.s32.totalorder %s15, 0
      %p145 = por %p143, %p144
      %p146 = scmp.ne.s32.totalorder %s135, %s138
      %p147 = scmp.eq.s32.totalorder %s20, 1
      %p148 = por %p146, %p147
      %p149 = scmp.ne.s32.totalorder %s138, %s139
      %p150 = scmp.eq.s32.totalorder %s20, 0
      %p151 = por %p149, %p150
      %p152 = scmp.ne.s32.totalorder %s138, %s139
      %p153 = scmp.eq.s32.totalorder %s21, 1
      %p154 = por %p152, %p153
      %p156 = scmp.ne.s32.totalorder %s139, %s155
      %p157 = scmp.eq.s32.totalorder %s21, 0
      %p158 = por %p156, %p157
      %p159 = scmp.le.s32.totalorder 1, %s15
      %p160 = scmp.lt.s32.totalorder %s15, 3
      %p161 = pnand %p159, %p160
      %p162 = pneg %p161
      // Predicated region
      $region9: #{tweet_disaster_forward.1} parent=5 // pred_check
        _
      $region10: #{tweet_disaster_forward.1} parent=5 // pred_check_branch
        %164 = sbr.rel (%p161) target = $region12
      $region11: #{tweet_disaster_forward.1} parent=5 // pred_region
        %s165 = ssub.s32 %s15, 1
        // Predicated region
        $region13: #{tweet_disaster_forward.1} parent=11 // pred_check
          %p166 = pneg %p62
        $region14: #{tweet_disaster_forward.1} parent=11 // pred_check_branch
          %168 = sbr.rel (%p166) target = $region16
        $region15: #{tweet_disaster_forward.1} parent=11 // pred_region
          %s170 = ssub.s32 2048, 2048
          %171 = vsyncadd [#allocation5], %s170
          %s172 = sshll.u32 [#allocation4], 4
          %s173 = int_to_ptr.vmem [resolvable:$true] %s172
          %178 = dma.hbm_to_vmem [thread:$0]  %s1, 2048, %s173, [#allocation5], 128, 128, 8
        $region16: #{tweet_disaster_forward.1} parent=11 // pred_fallthru
          _
        // Predicated region
        $region17: #{tweet_disaster_forward.1} parent=11 // pred_check
          %p179 = pneg %p83
        $region18: #{tweet_disaster_forward.1} parent=11 // pred_check_branch
          %181 = sbr.rel (%p179) target = $region20
        $region19: #{tweet_disaster_forward.1} parent=11 // pred_region
          _
        $region20: #{tweet_disaster_forward.1} parent=11 // pred_fallthru
          _
        // Predicated region
        $region21: #{tweet_disaster_forward.1} parent=11 // pred_check
          %p182 = pneg %p104
        $region22: #{tweet_disaster_forward.1} parent=11 // pred_check_branch
          %184 = sbr.rel (%p182) target = $region24
        $region23: #{tweet_disaster_forward.1} parent=11 // pred_region
          %s186 = ssub.s32 2048, 2048
          %187 = vsyncadd [#allocation5], %s186
          %s188 = sshll.u32 [#allocation6], 4
          %s189 = int_to_ptr.vmem [resolvable:$true] %s188
          %194 = dma.hbm_to_vmem [thread:$0]  %s3, 2048, %s189, [#allocation5], 128, 128, 8
        $region24: #{tweet_disaster_forward.1} parent=11 // pred_fallthru
          _
        // Predicated region
        $region25: #{tweet_disaster_forward.1} parent=11 // pred_check
          %p195 = pneg %p125
        $region26: #{tweet_disaster_forward.1} parent=11 // pred_check_branch
          %197 = sbr.rel (%p195) target = $region28
        $region27: #{tweet_disaster_forward.1} parent=11 // pred_region
          _
        $region28: #{tweet_disaster_forward.1} parent=11 // pred_fallthru
          _
      $region12: #{tweet_disaster_forward.1} parent=5 // pred_fallthru
        _
      %p198 = scmp.lt.s32.totalorder %s15, 2
      // Predicated region
      $region29: #{tweet_disaster_forward.1} parent=5 // pred_check
        %p199 = pneg %p198
      $region30: #{tweet_disaster_forward.1} parent=5 // pred_check_branch
        %201 = sbr.rel (%p199) target = $region32
      $region31: #{tweet_disaster_forward.1} parent=5 // pred_region
        // Predicated region
        $region33: #{tweet_disaster_forward.1} parent=31 // pred_check
          %p202 = pneg %p35
        $region34: #{tweet_disaster_forward.1} parent=31 // pred_check_branch
          %204 = sbr.rel (%p202) target = $region36
        $region35: #{tweet_disaster_forward.1} parent=31 // pred_region
          %s205 = sand.u32 %s25, 1
          %s206 = scalar_lea.sflag [#allocation3], %s205
          %s207 = sand.u32 %s25, 1
          %s208 = smul.addr %s207, 128
          %s209 = scalar_lea.vmem [#allocation2], %s208
          %s210 = smul.u32 16, %s15
          %s212 = ssub.s32 2048, 2048
          %213 = vsyncadd %s206, %s212
          %s214 = smul.addr %s210, 128
          %s215 = scalar_lea.hbm %s0, %s214
          %s216 = sshll.u32 %s209, 4
          %s217 = int_to_ptr.vmem [resolvable:$true] %s216
          %222 = dma.hbm_to_vmem [thread:$0]  %s215, 2048, %s217, %s206, 128, 128, 8
        $region36: #{tweet_disaster_forward.1} parent=31 // pred_fallthru
          _
      $region32: #{tweet_disaster_forward.1} parent=5 // pred_fallthru
        _
      %p223 = scmp.le.s32.totalorder 1, %s15
      %p224 = scmp.lt.s32.totalorder %s15, 3
      %p225 = pnand %p223, %p224
      %p226 = pneg %p225
      // Predicated region
      $region37: #{tweet_disaster_forward.1} parent=5 // pred_check
        _
      $region38: #{tweet_disaster_forward.1} parent=5 // pred_check_branch
        %228 = sbr.rel (%p225) target = $region40
      $region39: #{tweet_disaster_forward.1} parent=5 // pred_region
        %s229 = ssub.s32 %s15, 1
        %s230 = sand.u32 %s28, 1
        %s231 = scalar_lea.sflag [#allocation3], %s230
        %s232 = sand.u32 %s28, 1
        %s233 = smul.addr %s232, 128
        %s234 = scalar_lea.vmem [#allocation2], %s233
        // Predicated region
        $region41: #{tweet_disaster_forward.1} parent=39 // pred_check
          %p235 = pneg %p41
        $region42: #{tweet_disaster_forward.1} parent=39 // pred_check_branch
          %237 = sbr.rel (%p235) target = $region44
        $region43: #{tweet_disaster_forward.1} parent=39 // pred_region
          %238 = dma.done %s231, 2048
        $region44: #{tweet_disaster_forward.1} parent=39 // pred_fallthru
          _
        // Predicated region
        $region45: #{tweet_disaster_forward.1} parent=39 // pred_check
          %p239 = pneg %p62
        $region46: #{tweet_disaster_forward.1} parent=39 // pred_check_branch
          %241 = sbr.rel (%p239) target = $region48
        $region47: #{tweet_disaster_forward.1} parent=39 // pred_region
          %242 = dma.done [#allocation5], 2048
        $region48: #{tweet_disaster_forward.1} parent=39 // pred_fallthru
          _
        // Predicated region
        $region49: #{tweet_disaster_forward.1} parent=39 // pred_check
          %p243 = pneg %p104
        $region50: #{tweet_disaster_forward.1} parent=39 // pred_check_branch
          %245 = sbr.rel (%p243) target = $region52
        $region51: #{tweet_disaster_forward.1} parent=39 // pred_region
          %246 = dma.done [#allocation5], 2048
        $region52: #{tweet_disaster_forward.1} parent=39 // pred_fallthru
          _
        %s247 = sand.u32 %s28, 1
        %s248 = scalar_lea.sflag [#allocation3], %s247
        %s249 = sand.u32 %s28, 1
        %s250 = smul.addr %s249, 128
        %s251 = scalar_lea.vmem [#allocation2], %s250
        %p252 = pneg %p41
        %p253 = pneg %p38
        %p254 = pneg %p62
        %p255 = pneg %p59
        %p256 = pneg %p83
        %p257 = pneg %p80
        %p258 = pneg %p104
        %p259 = pneg %p101
        %p260 = pneg %p125
        %p261 = pneg %p122
        %p262 = pneg %p151
        %p263 = pneg %p148
        %s264 = smul.u32 16, %s20
        %p265 = scmp.lt.s32.totalorder %s264, 31
        %s266 = scalar_select %p265, %s264, 31
        %s267 = smul.addr %s266, 8
        %s268 = scalar_lea.vmem %s5, %s267
        %s269 = smul.u32 16, %s20
        %s270 = smul.u32 16, %s20
        %p271 = scmp.lt.s32.totalorder %s270, 31
        %s272 = scalar_select %p271, %s270, 31
        %s273 = smul.addr %s272, 8
        %s274 = scalar_lea.vmem %s5, %s273
        %s275 = smul.u32 16, %s20
        %v276 = vld [vmem:[%s234] sm:$0xff]
        %v277 = vld [vmem:[%s234 + $0x8] sm:$0xff]
        %v278 = vld [vmem:[%s234 + $0x10] sm:$0xff]
        %v279 = vld [vmem:[%s234 + $0x18] sm:$0xff]
        %v280 = vld [vmem:[%s234 + $0x20] sm:$0xff]
        %v281 = vld [vmem:[%s234 + $0x28] sm:$0xff]
        %v282 = vld [vmem:[%s234 + $0x30] sm:$0xff]
        %v283 = vld [vmem:[%s234 + $0x38] sm:$0xff]
        %v284 = vld [vmem:[%s234 + $0x40] sm:$0xff]
        %v285 = vld [vmem:[%s234 + $0x48] sm:$0xff]
        %v286 = vld [vmem:[%s234 + $0x50] sm:$0xff]
        %v287 = vld [vmem:[%s234 + $0x58] sm:$0xff]
        %v288 = vld [vmem:[%s234 + $0x60] sm:$0xff]
        %v289 = vld [vmem:[%s234 + $0x68] sm:$0xff]
        %v290 = vld [vmem:[%s234 + $0x70] sm:$0xff]
        %v291 = vld [vmem:[%s234 + $0x78] sm:$0xff]
        %v292 = vld [vmem:[#allocation4] sm:$0xff]
        %v293 = vld [vmem:[#allocation4 + $0x8] sm:$0xff]
        %v294 = vld [vmem:[#allocation4 + $0x10] sm:$0xff]
        %v295 = vld [vmem:[#allocation4 + $0x18] sm:$0xff]
        %v296 = vld [vmem:[#allocation4 + $0x20] sm:$0xff]
        %v297 = vld [vmem:[#allocation4 + $0x28] sm:$0xff]
        %v298 = vld [vmem:[#allocation4 + $0x30] sm:$0xff]
        %v299 = vld [vmem:[#allocation4 + $0x38] sm:$0xff]
        %v300 = vld [vmem:[#allocation4 + $0x40] sm:$0xff]
        %v301 = vld [vmem:[#allocation4 + $0x48] sm:$0xff]
        %v302 = vld [vmem:[#allocation4 + $0x50] sm:$0xff]
        %v303 = vld [vmem:[#allocation4 + $0x58] sm:$0xff]
        %v304 = vld [vmem:[#allocation4 + $0x60] sm:$0xff]
        %v305 = vld [vmem:[#allocation4 + $0x68] sm:$0xff]
        %v306 = vld [vmem:[#allocation4 + $0x70] sm:$0xff]
        %v307 = vld [vmem:[#allocation4 + $0x78] sm:$0xff]
        %v308 = vld [vmem:[%s2] sm:$0x1]
        %v310 = vlaneseq
        %v311 = vshrl.u32 %v310, 7
        %v312 = vsub.s32 0, %v311
        %v313 = vrot.slane %v308, %v312
        %315 = vmatprep.subr.mxu0 0.0
        %316 = vmatpush1.msra.mxu0 %v292
        %317 = vmatprep.subr.mxu0 0.0
        %318 = vmatpush1.msra.mxu0 %v293
        %319 = vmatprep.subr.mxu0 0.0
        %320 = vmatpush1.msra.mxu0 %v294
        %321 = vmatprep.subr.mxu0 0.0
        %322 = vmatpush1.msra.mxu0 %v295
        %323 = vmatprep.subr.mxu0 0.0
        %324 = vmatpush1.msra.mxu0 %v296
        %325 = vmatprep.subr.mxu0 0.0
        %326 = vmatpush1.msra.mxu0 %v297
        %327 = vmatprep.subr.mxu0 0.0
        %328 = vmatpush1.msra.mxu0 %v298
        %329 = vmatprep.subr.mxu0 0.0
        %330 = vmatpush1.msra.mxu0 %v299
        %331 = vmatprep.subr.mxu0 0.0
        %332 = vmatpush1.msra.mxu0 %v300
        %333 = vmatprep.subr.mxu0 0.0
        %334 = vmatpush1.msra.mxu0 %v301
        %335 = vmatprep.subr.mxu0 0.0
        %336 = vmatpush1.msra.mxu0 %v302
        %337 = vmatprep.subr.mxu0 0.0
        %338 = vmatpush1.msra.mxu0 %v303
        %339 = vmatprep.subr.mxu0 0.0
        %340 = vmatpush1.msra.mxu0 %v304
        %341 = vmatprep.subr.mxu0 0.0
        %342 = vmatpush1.msra.mxu0 %v305
        %343 = vmatprep.subr.mxu0 0.0
        %344 = vmatpush1.msra.mxu0 %v306
        %345 = vmatprep.subr.mxu0 0.0
        %346 = vmatpush1.msra.mxu0 %v307
        %347 = vmatprep.subr.mxu0 0.0
        %348 = vmatpush1.msra.mxu0 0.0
        %349 = vmatprep.subr.mxu0 0.0
        %350 = vmatpush1.msra.mxu0 0.0
        %351 = vmatprep.subr.mxu0 0.0
        %352 = vmatpush1.msra.mxu0 0.0
        %353 = vmatprep.subr.mxu0 0.0
        %354 = vmatpush1.msra.mxu0 0.0
        %355 = vmatprep.subr.mxu0 0.0
        %356 = vmatpush1.msra.mxu0 0.0
        %357 = vmatprep.subr.mxu0 0.0
        %358 = vmatpush1.msra.mxu0 0.0
        %359 = vmatprep.subr.mxu0 0.0
        %360 = vmatpush1.msra.mxu0 0.0
        %361 = vmatprep.subr.mxu0 0.0
        %362 = vmatpush1.msra.mxu0 0.0
        %363 = vmatprep.subr.mxu0 0.0
        %364 = vmatpush1.msra.mxu0 0.0
        %365 = vmatprep.subr.mxu0 0.0
        %366 = vmatpush1.msra.mxu0 0.0
        %367 = vmatprep.subr.mxu0 0.0
        %368 = vmatpush1.msra.mxu0 0.0
        %369 = vmatprep.subr.mxu0 0.0
        %370 = vmatpush1.msra.mxu0 0.0
        %371 = vmatprep.subr.mxu0 0.0
        %372 = vmatpush1.msra.mxu0 0.0
        %373 = vmatprep.subr.mxu0 0.0
        %374 = vmatpush1.msra.mxu0 0.0
        %375 = vmatprep.subr.mxu0 0.0
        %376 = vmatpush1.msra.mxu0 0.0
        %377 = vmatprep.subr.mxu0 0.0
        %378 = vmatpush1.msra.mxu0 0.0
        %379 = vmatprep.mubr.f32.mxu0 0.0
        %380 = vmatmul.mubr.f32.gmra.mrb[0].mxu0 %v276
        %v381 = vpop.f32.mrb[0].mxu0
        %v382 = vadd.f32 %v313, %v381
        %v383 = vpop.f32.mrb[0].mxu0
        %384 = vmatprep.mubr.f32.mxu0 0.0
        %385 = vmatmul.mubr.f32.gmra.mrb[0].mxu0 %v277
        %v386 = vpop.f32.mrb[0].mxu0
        %v387 = vadd.f32 %v313, %v386
        %v388 = vpop.f32.mrb[0].mxu0
        %389 = vmatprep.mubr.f32.mxu0 0.0
        %390 = vmatmul.mubr.f32.gmra.mrb[0].mxu0 %v278
        %v391 = vpop.f32.mrb[0].mxu0
        %v392 = vadd.f32 %v313, %v391
        %v393 = vpop.f32.mrb[0].mxu0
        %394 = vmatprep.mubr.f32.mxu0 0.0
        %395 = vmatmul.mubr.f32.gmra.mrb[0].mxu0 %v279
        %v396 = vpop.f32.mrb[0].mxu0
        %v397 = vadd.f32 %v313, %v396
        %v398 = vpop.f32.mrb[0].mxu0
        %399 = vmatprep.mubr.f32.mxu0 0.0
        %400 = vmatmul.mubr.f32.gmra.mrb[0].mxu0 %v280
        %v401 = vpop.f32.mrb[0].mxu0
        %v402 = vadd.f32 %v313, %v401
        %v403 = vpop.f32.mrb[0].mxu0
        %404 = vmatprep.mubr.f32.mxu0 0.0
        %405 = vmatmul.mubr.f32.gmra.mrb[0].mxu0 %v281
        %v406 = vpop.f32.mrb[0].mxu0
        %v407 = vadd.f32 %v313, %v406
        %v408 = vpop.f32.mrb[0].mxu0
        %409 = vmatprep.mubr.f32.mxu0 0.0
        %410 = vmatmul.mubr.f32.gmra.mrb[0].mxu0 %v282
        %v411 = vpop.f32.mrb[0].mxu0
        %v412 = vadd.f32 %v313, %v411
        %v413 = vpop.f32.mrb[0].mxu0
        %414 = vmatprep.mubr.f32.mxu0 0.0
        %415 = vmatmul.mubr.f32.gmra.mrb[0].mxu0 %v283
        %v416 = vpop.f32.mrb[0].mxu0
        %v417 = vadd.f32 %v313, %v416
        %v418 = vpop.f32.mrb[0].mxu0
        %419 = vmatprep.mubr.f32.mxu0 0.0
        %420 = vmatmul.mubr.f32.gmra.mrb[0].mxu0 %v284
        %v421 = vpop.f32.mrb[0].mxu0
        %v422 = vadd.f32 %v313, %v421
        %v423 = vpop.f32.mrb[0].mxu0
        %424 = vmatprep.mubr.f32.mxu0 0.0
        %425 = vmatmul.mubr.f32.gmra.mrb[0].mxu0 %v285
        %v426 = vpop.f32.mrb[0].mxu0
        %v427 = vadd.f32 %v313, %v426
        %v428 = vpop.f32.mrb[0].mxu0
        %429 = vmatprep.mubr.f32.mxu0 0.0
        %430 = vmatmul.mubr.f32.gmra.mrb[0].mxu0 %v286
        %v431 = vpop.f32.mrb[0].mxu0
        %v432 = vadd.f32 %v313, %v431
        %v433 = vpop.f32.mrb[0].mxu0
        %434 = vmatprep.mubr.f32.mxu0 0.0
        %435 = vmatmul.mubr.f32.gmra.mrb[0].mxu0 %v287
        %v436 = vpop.f32.mrb[0].mxu0
        %v437 = vadd.f32 %v313, %v436
        %v438 = vpop.f32.mrb[0].mxu0
        %439 = vmatprep.mubr.f32.mxu0 0.0
        %440 = vmatmul.mubr.f32.gmra.mrb[0].mxu0 %v288
        %v441 = vpop.f32.mrb[0].mxu0
        %v442 = vadd.f32 %v313, %v441
        %v443 = vpop.f32.mrb[0].mxu0
        %444 = vmatprep.mubr.f32.mxu0 0.0
        %445 = vmatmul.mubr.f32.gmra.mrb[0].mxu0 %v289
        %v446 = vpop.f32.mrb[0].mxu0
        %v447 = vadd.f32 %v313, %v446
        %v448 = vpop.f32.mrb[0].mxu0
        %449 = vmatprep.mubr.f32.mxu0 0.0
        %450 = vmatmul.mubr.f32.gmra.mrb[0].mxu0 %v290
        %v451 = vpop.f32.mrb[0].mxu0
        %v452 = vadd.f32 %v313, %v451
        %v453 = vpop.f32.mrb[0].mxu0
        %454 = vmatprep.mubr.f32.mxu0 0.0
        %455 = vmatmul.mubr.f32.gmra.mrb[0].mxu0 %v291
        %v456 = vpop.f32.mrb[0].mxu0
        %v457 = vadd.f32 %v313, %v456
        %v458 = vpop.f32.mrb[0].mxu0
        %459 = vdwg.mxu0
        %v460 = vmax.f32 %v382, 0.0
        %v461 = vmax.f32 %v387, 0.0
        %v462 = vmax.f32 %v392, 0.0
        %v463 = vmax.f32 %v397, 0.0
        %v464 = vmax.f32 %v402, 0.0
        %v465 = vmax.f32 %v407, 0.0
        %v466 = vmax.f32 %v412, 0.0
        %v467 = vmax.f32 %v417, 0.0
        %v468 = vmax.f32 %v422, 0.0
        %v469 = vmax.f32 %v427, 0.0
        %v470 = vmax.f32 %v432, 0.0
        %v471 = vmax.f32 %v437, 0.0
        %v472 = vmax.f32 %v442, 0.0
        %v473 = vmax.f32 %v447, 0.0
        %v474 = vmax.f32 %v452, 0.0
        %v475 = vmax.f32 %v457, 0.0
        %v476 = vld [vmem:[#allocation6] sm:$0xff]
        %v477 = vld [vmem:[#allocation6 + $0x8] sm:$0xff]
        %v478 = vld [vmem:[#allocation6 + $0x10] sm:$0xff]
        %v479 = vld [vmem:[#allocation6 + $0x18] sm:$0xff]
        %v480 = vld [vmem:[#allocation6 + $0x20] sm:$0xff]
        %v481 = vld [vmem:[#allocation6 + $0x28] sm:$0xff]
        %v482 = vld [vmem:[#allocation6 + $0x30] sm:$0xff]
        %v483 = vld [vmem:[#allocation6 + $0x38] sm:$0xff]
        %v484 = vld [vmem:[#allocation6 + $0x40] sm:$0xff]
        %v485 = vld [vmem:[#allocation6 + $0x48] sm:$0xff]
        %v486 = vld [vmem:[#allocation6 + $0x50] sm:$0xff]
        %v487 = vld [vmem:[#allocation6 + $0x58] sm:$0xff]
        %v488 = vld [vmem:[#allocation6 + $0x60] sm:$0xff]
        %v489 = vld [vmem:[#allocation6 + $0x68] sm:$0xff]
        %v490 = vld [vmem:[#allocation6 + $0x70] sm:$0xff]
        %v491 = vld [vmem:[#allocation6 + $0x78] sm:$0xff]
        %v492 = vld [vmem:[%s4] sm:$0x1]
        %v494 = vlaneseq
        %v495 = vshrl.u32 %v494, 7
        %v496 = vsub.s32 0, %v495
        %v497 = vrot.slane %v492, %v496
        %499 = vmatprep.subr.mxu0 0.0
        %500 = vmatpush1.msra.mxu0 %v476
        %501 = vmatprep.subr.mxu0 0.0
        %502 = vmatpush1.msra.mxu0 %v477
        %503 = vmatprep.subr.mxu0 0.0
        %504 = vmatpush1.msra.mxu0 %v478
        %505 = vmatprep.subr.mxu0 0.0
        %506 = vmatpush1.msra.mxu0 %v479
        %507 = vmatprep.subr.mxu0 0.0
        %508 = vmatpush1.msra.mxu0 %v480
        %509 = vmatprep.subr.mxu0 0.0
        %510 = vmatpush1.msra.mxu0 %v481
        %511 = vmatprep.subr.mxu0 0.0
        %512 = vmatpush1.msra.mxu0 %v482
        %513 = vmatprep.subr.mxu0 0.0
        %514 = vmatpush1.msra.mxu0 %v483
        %515 = vmatprep.subr.mxu0 0.0
        %516 = vmatpush1.msra.mxu0 %v484
        %517 = vmatprep.subr.mxu0 0.0
        %518 = vmatpush1.msra.mxu0 %v485
        %519 = vmatprep.subr.mxu0 0.0
        %520 = vmatpush1.msra.mxu0 %v486
        %521 = vmatprep.subr.mxu0 0.0
        %522 = vmatpush1.msra.mxu0 %v487
        %523 = vmatprep.subr.mxu0 0.0
        %524 = vmatpush1.msra.mxu0 %v488
        %525 = vmatprep.subr.mxu0 0.0
        %526 = vmatpush1.msra.mxu0 %v489
        %527 = vmatprep.subr.mxu0 0.0
        %528 = vmatpush1.msra.mxu0 %v490
        %529 = vmatprep.subr.mxu0 0.0
        %530 = vmatpush1.msra.mxu0 %v491
        %531 = vmatprep.subr.mxu0 0.0
        %532 = vmatpush1.msra.mxu0 0.0
        %533 = vmatprep.subr.mxu0 0.0
        %534 = vmatpush1.msra.mxu0 0.0
        %535 = vmatprep.subr.mxu0 0.0
        %536 = vmatpush1.msra.mxu0 0.0
        %537 = vmatprep.subr.mxu0 0.0
        %538 = vmatpush1.msra.mxu0 0.0
        %539 = vmatprep.subr.mxu0 0.0
        %540 = vmatpush1.msra.mxu0 0.0
        %541 = vmatprep.subr.mxu0 0.0
        %542 = vmatpush1.msra.mxu0 0.0
        %543 = vmatprep.subr.mxu0 0.0
        %544 = vmatpush1.msra.mxu0 0.0
        %545 = vmatprep.subr.mxu0 0.0
        %546 = vmatpush1.msra.mxu0 0.0
        %547 = vmatprep.subr.mxu0 0.0
        %548 = vmatpush1.msra.mxu0 0.0
        %549 = vmatprep.subr.mxu0 0.0
        %550 = vmatpush1.msra.mxu0 0.0
        %551 = vmatprep.subr.mxu0 0.0
        %552 = vmatpush1.msra.mxu0 0.0
        %553 = vmatprep.subr.mxu0 0.0
        %554 = vmatpush1.msra.mxu0 0.0
        %555 = vmatprep.subr.mxu0 0.0
        %556 = vmatpush1.msra.mxu0 0.0
        %557 = vmatprep.subr.mxu0 0.0
        %558 = vmatpush1.msra.mxu0 0.0
        %559 = vmatprep.subr.mxu0 0.0
        %560 = vmatpush1.msra.mxu0 0.0
        %561 = vmatprep.subr.mxu0 0.0
        %562 = vmatpush1.msra.mxu0 0.0
        %563 = vmatprep.mubr.f32.mxu0 0.0
        %564 = vmatmul.mubr.f32.gmra.mrb[0].mxu0 %v460
        %v565 = vpop.f32.mrb[0].mxu0
        %v566 = vadd.f32 %v497, %v565
        %v567 = vpop.f32.mrb[0].mxu0
        %568 = vmatprep.mubr.f32.mxu0 0.0
        %569 = vmatmul.mubr.f32.gmra.mrb[0].mxu0 %v461
        %v570 = vpop.f32.mrb[0].mxu0
        %v571 = vadd.f32 %v497, %v570
        %v572 = vpop.f32.mrb[0].mxu0
        %573 = vmatprep.mubr.f32.mxu0 0.0
        %574 = vmatmul.mubr.f32.gmra.mrb[0].mxu0 %v462
        %v575 = vpop.f32.mrb[0].mxu0
        %v576 = vadd.f32 %v497, %v575
        %v577 = vpop.f32.mrb[0].mxu0
        %578 = vmatprep.mubr.f32.mxu0 0.0
        %579 = vmatmul.mubr.f32.gmra.mrb[0].mxu0 %v463
        %v580 = vpop.f32.mrb[0].mxu0
        %v581 = vadd.f32 %v497, %v580
        %v582 = vpop.f32.mrb[0].mxu0
        %583 = vmatprep.mubr.f32.mxu0 0.0
        %584 = vmatmul.mubr.f32.gmra.mrb[0].mxu0 %v464
        %v585 = vpop.f32.mrb[0].mxu0
        %v586 = vadd.f32 %v497, %v585
        %v587 = vpop.f32.mrb[0].mxu0
        %588 = vmatprep.mubr.f32.mxu0 0.0
        %589 = vmatmul.mubr.f32.gmra.mrb[0].mxu0 %v465
        %v590 = vpop.f32.mrb[0].mxu0
        %v591 = vadd.f32 %v497, %v590
        %v592 = vpop.f32.mrb[0].mxu0
        %593 = vmatprep.mubr.f32.mxu0 0.0
        %594 = vmatmul.mubr.f32.gmra.mrb[0].mxu0 %v466
        %v595 = vpop.f32.mrb[0].mxu0
        %v596 = vadd.f32 %v497, %v595
        %v597 = vpop.f32.mrb[0].mxu0
        %598 = vmatprep.mubr.f32.mxu0 0.0
        %599 = vmatmul.mubr.f32.gmra.mrb[0].mxu0 %v467
        %v600 = vpop.f32.mrb[0].mxu0
        %v601 = vadd.f32 %v497, %v600
        %v602 = vpop.f32.mrb[0].mxu0
        %603 = vmatprep.mubr.f32.mxu0 0.0
        %604 = vmatmul.mubr.f32.gmra.mrb[0].mxu0 %v468
        %v605 = vpop.f32.mrb[0].mxu0
        %v606 = vadd.f32 %v497, %v605
        %v607 = vpop.f32.mrb[0].mxu0
        %608 = vmatprep.mubr.f32.mxu0 0.0
        %609 = vmatmul.mubr.f32.gmra.mrb[0].mxu0 %v469
        %v610 = vpop.f32.mrb[0].mxu0
        %v611 = vadd.f32 %v497, %v610
        %v612 = vpop.f32.mrb[0].mxu0
        %613 = vmatprep.mubr.f32.mxu0 0.0
        %614 = vmatmul.mubr.f32.gmra.mrb[0].mxu0 %v470
        %v615 = vpop.f32.mrb[0].mxu0
        %v616 = vadd.f32 %v497, %v615
        %v617 = vpop.f32.mrb[0].mxu0
        %618 = vmatprep.mubr.f32.mxu0 0.0
        %619 = vmatmul.mubr.f32.gmra.mrb[0].mxu0 %v471
        %v620 = vpop.f32.mrb[0].mxu0
        %v621 = vadd.f32 %v497, %v620
        %v622 = vpop.f32.mrb[0].mxu0
        %623 = vmatprep.mubr.f32.mxu0 0.0
        %624 = vmatmul.mubr.f32.gmra.mrb[0].mxu0 %v472
        %v625 = vpop.f32.mrb[0].mxu0
        %v626 = vadd.f32 %v497, %v625
        %v627 = vpop.f32.mrb[0].mxu0
        %628 = vmatprep.mubr.f32.mxu0 0.0
        %629 = vmatmul.mubr.f32.gmra.mrb[0].mxu0 %v473
        %v630 = vpop.f32.mrb[0].mxu0
        %v631 = vadd.f32 %v497, %v630
        %v632 = vpop.f32.mrb[0].mxu0
        %633 = vmatprep.mubr.f32.mxu0 0.0
        %634 = vmatmul.mubr.f32.gmra.mrb[0].mxu0 %v474
        %v635 = vpop.f32.mrb[0].mxu0
        %v636 = vadd.f32 %v497, %v635
        %v637 = vpop.f32.mrb[0].mxu0
        %638 = vmatprep.mubr.f32.mxu0 0.0
        %639 = vmatmul.mubr.f32.gmra.mrb[0].mxu0 %v475
        %v640 = vpop.f32.mrb[0].mxu0
        %v641 = vadd.f32 %v497, %v640
        %v642 = vpop.f32.mrb[0].mxu0
        %643 = vdwg.mxu0
        %644 = vst [vmem:[%s274] sm:$0xff] %v566
        %645 = vst [vmem:[%s274 + $0x8] sm:$0xff] %v571
        %646 = vst [vmem:[%s274 + $0x10] sm:$0xff] %v576
        %647 = vst [vmem:[%s274 + $0x18] sm:$0xff] %v581
        %648 = vst [vmem:[%s274 + $0x20] sm:$0xff] %v586
        %649 = vst [vmem:[%s274 + $0x28] sm:$0xff] %v591
        %650 = vst [vmem:[%s274 + $0x30] sm:$0xff] %v596
        %651 = vst [vmem:[%s274 + $0x38] sm:$0xff] %v601
        %652 = vst [vmem:[%s274 + $0x40] sm:$0xff] %v606
        %653 = vst [vmem:[%s274 + $0x48] sm:$0xff] %v611
        %654 = vst [vmem:[%s274 + $0x50] sm:$0xff] %v616
        %655 = vst [vmem:[%s274 + $0x58] sm:$0xff] %v621
        %656 = vst [vmem:[%s274 + $0x60] sm:$0xff] %v626
        %657 = vst [vmem:[%s274 + $0x68] sm:$0xff] %v631
        %658 = vst [vmem:[%s274 + $0x70] sm:$0xff] %v636
        %659 = vst [vmem:[%s274 + $0x78] sm:$0xff] %v641
        %s660 = smul.u32 16, %s20
        %p661 = scmp.lt.s32.totalorder %s660, 31
        %s662 = scalar_select %p661, %s660, 31
        %s663 = smul.addr %s662, 8
        %s664 = scalar_lea.vmem %s5, %s663
        // Predicated region
        $region53: #{tweet_disaster_forward.1} parent=39 // pred_check
          %p665 = pneg %p148
        $region54: #{tweet_disaster_forward.1} parent=39 // pred_check_branch
          %667 = sbr.rel (%p665) target = $region56
        $region55: #{tweet_disaster_forward.1} parent=39 // pred_region
          %s668 = smul.u32 16, %s20
        $region56: #{tweet_disaster_forward.1} parent=39 // pred_fallthru
          _
      $region40: #{tweet_disaster_forward.1} parent=5 // pred_fallthru
        _
      %p669 = scmp.le.s32.totalorder 2, %s15
      // Predicated region
      $region57: #{tweet_disaster_forward.1} parent=5 // pred_check
        %p670 = pneg %p669
      $region58: #{tweet_disaster_forward.1} parent=5 // pred_check_branch
        %672 = sbr.rel (%p670) target = $region60
      $region59: #{tweet_disaster_forward.1} parent=5 // pred_region
        %s673 = ssub.s32 %s15, 2
        // Predicated region
        $region61: #{tweet_disaster_forward.1} parent=59 // pred_check
          %p674 = pneg %p154
        $region62: #{tweet_disaster_forward.1} parent=59 // pred_check_branch
          %676 = sbr.rel (%p674) target = $region64
        $region63: #{tweet_disaster_forward.1} parent=59 // pred_region
          %s677 = smul.u32 16, %s21
          %p678 = scmp.lt.s32.totalorder %s677, 31
          %s679 = scalar_select %p678, %s677, 31
          %s680 = smul.addr %s679, 8
          %s681 = scalar_lea.vmem %s5, %s680
        $region64: #{tweet_disaster_forward.1} parent=59 // pred_fallthru
          _
      $region60: #{tweet_disaster_forward.1} parent=5 // pred_fallthru
        _
    $region6: #{tweet_disaster_forward.1} parent=1 // loop_footer
      %s19 = sadd.s32 1, %s15
    $region7: #{tweet_disaster_forward.1} parent=1 // loop_footer_branch
      %14 = sbr.rel target = $region3
    $region8: #{tweet_disaster_forward.1} parent=1 // loop_exit
      _
    %682 = vsyncpa [#allocation3], 1
    %s683 = scalar_lea.sflag [#allocation3], 1
    %684 = vsyncpa %s683, 1
    %685 = vsyncpa [#allocation5], 1

</llo_original>
